<compile_context>
chip_gen: v6e
topology: v6e:2x2x1
jax: 0.10.0
libtpu: 0.0.40
codegen_flags: <defaults>
</compile_context>

<pallas_src>
import functools

import jax
import jax.numpy as jnp
from jax.experimental import pallas as pl
from jax.experimental.pallas import tpu as pltpu


EPS = 1e-6


def _round_up(n, m):
    return ((n + m - 1) // m) * m


def _vmem_capacity_bytes():
    """Physical VMEM per TensorCore (v5e/v6e: 128 MiB, v7x: 64 MiB)."""
    try:
        return int(pltpu.get_tpu_info().vmem_capacity_bytes)
    except Exception:
        pass
    try:
        kind = jax.devices()[0].device_kind.lower()
        if "v5" in kind or "v6" in kind:
            return 128 * 1024 * 1024
    except Exception:
        pass
    return 64 * 1024 * 1024  # conservative (v7x per-core capacity)


def _sublayer_connection_kernel(x_ref, p_ref, w_ref, o_ref, *, eps):
    # x_ref: (tm, D) tile of the flattened [rows, features] input.
    # p_ref: (3, D) packed [a_2; b_2; linear bias].
    # w_ref: (D, D) resident Linear weight (f32 or bf16 MXU operand).
    x = x_ref[...].astype(jnp.float32)
    d = x.shape[-1]

    p = p_ref[...]
    a2 = p[0, :]
    b2 = p[1, :]
    wb = p[2, :]

    # --- LayerNorm (PyTorch x.std(-1) semantics: unbiased std, eps on std) ---
    mean = jnp.mean(x, axis=-1, keepdims=True)
    xc = x - mean
    var_unbiased = jnp.sum(xc * xc, axis=-1, keepdims=True) / (d - 1)
    std = jnp.sqrt(var_unbiased)
    inv = 1.0 / (std + eps)                 # exact; only (tm, 1) divides
    y = a2 * (xc * inv) + b2

    # --- sublayer: Linear(size, size) on the MXU, f32 accumulate ---
    h = jnp.dot(y.astype(w_ref.dtype), w_ref[...],
                preferred_element_type=jnp.float32) + wb

    # --- dropout (eval mode -> identity) + residual ---
    # TODO(synk): train-mode dropout (pltpu.prng_seed + stateful_bernoulli keep
    # mask with 1/(1-p) scaling); eval-mode identity here.
    o_ref[...] = (x + h).astype(o_ref.dtype)


def sublayer_connection(x, a_2, b_2, w, w_b, *, tm=512,
                        matmul_dtype=jnp.bfloat16):
    """x: [batch, seq, D].  Returns x + Linear(LayerNorm(x)) (eval dropout).

    tm: requested row tile of the flattened [B*S, D] input per grid step
        (default 512; sweep 512/1024 on large inputs).  Auto-shrunk for small
        inputs / the per-core VMEM budget, and split so the grid has >= 2
        steps (both v7x TensorCores get work).
    matmul_dtype: dtype of the MXU operands.  Default bf16 (bf16-native MXU on
        all generations, half the resident-weight VMEM/DMA); LayerNorm and the
        residual always stay f32.  Pass None / jnp.float32 for exact f32.
    """
    B, S, D = x.shape
    M = B * S
    itemsize = 4  # f32 rows / output

    w_in = w.astype(jnp.float32) if matmul_dtype is None else w.astype(matmul_dtype)
    w_bytes = D * D * jnp.dtype(w_in.dtype).itemsize

    # ---- choose row tile -------------------------------------------------
    if M <= 8:
        tm = M  # full-extent first dim (allowed even when < 8 sublanes)
    else:
        tm = _round_up(max(8, min(int(tm), _round_up(M, 8))), 8)

        cap = int(0.60 * _vmem_capacity_bytes())
        # double-buffered weight + packed (3, D) params
        const_bytes = 2 * w_bytes + 2 * 3 * D * itemsize

        def _tiles_bytes(t):
            # (x in + out) double-buffered + ~4 live f32 (tm, D) temporaries
            return 8 * t * D * itemsize

        while tm > 256 and _tiles_bytes(tm) + const_bytes > cap:
            tm = max(256, tm // 2)
        tm = max(8, min(tm, _round_up(M, 8)))

        # v7x megacore: make sure the "parallel" row axis has >= 2 steps.
        if pl.cdiv(M, tm) < 2:
            tm = max(8, _round_up(pl.cdiv(M, 2), 8))

    grid = pl.cdiv(M, tm)

    # TODO(synk): for very large D (f32 weight > ~1/3 of per-core VMEM, i.e.
    # D >~ 3.5k f32 / ~5k bf16 on v7x) add a weight-column (tn) grid axis and
    # cache the LayerNorm'd y tile in VMEM scratch under pl.when(j == 0).

    x2 = x.reshape(M, D)
    params = jnp.stack([a_2.reshape(D), b_2.reshape(D),
                        w_b.reshape(D)]).astype(jnp.float32)  # (3, D)

    # VMEM limit: budgeted tiles + resident weight + headroom, capped below
    # physical capacity.
    tile_budget = 8 * tm * D * itemsize + 2 * w_bytes + 2 * 3 * D * itemsize
    vmem_limit = int(min(int(0.9 * _vmem_capacity_bytes()),
                         max(32 << 20, tile_budget + (16 << 20))))

    kernel = functools.partial(_sublayer_connection_kernel, eps=EPS)

    cost = pl.CostEstimate(
        flops=2 * M * D * D + 10 * M * D,
        transcendentals=M,  # one sqrt / reciprocal per row
        bytes_accessed=2 * M * D * itemsize + w_bytes + 3 * D * itemsize,
    )

    out = pl.pallas_call(
        kernel,
        out_shape=jax.ShapeDtypeStruct((M, D), x.dtype),
        grid_spec=pltpu.PrefetchScalarGridSpec(
            num_scalar_prefetch=0,
            grid=(grid,),
            in_specs=[
                pl.BlockSpec((tm, D), lambda i: (i, 0)),   # x rows (pipelined)
                pl.BlockSpec((3, D), lambda i: (0, 0)),    # packed a_2/b_2/bias
                pl.BlockSpec((D, D), lambda i: (0, 0)),    # resident weight
            ],
            out_specs=pl.BlockSpec((tm, D), lambda i: (i, 0)),
        ),
        compiler_params=pltpu.CompilerParams(
            dimension_semantics=("parallel",),
            vmem_limit_bytes=vmem_limit),
        cost_estimate=cost,
    )(x2, params, w_in)

    return out.reshape(B, S, D)


def _reference(x, a_2, b_2, w, w_b):
    """Pure-JAX reference mirroring the PyTorch module (eval-mode dropout)."""
    d = x.shape[-1]
    mean = jnp.mean(x, axis=-1, keepdims=True)
    xc = x - mean
    std = jnp.sqrt(jnp.sum(xc * xc, axis=-1, keepdims=True) / (d - 1))
    y = a_2 * xc / (std + EPS) + b_2
    h = jnp.einsum("bsd,de->bse", y, w) + w_b
    return x + h


if __name__ == "__main__":
    key = jax.random.PRNGKey(0)
    kx, kw, kb = jax.random.split(key, 3)

    B, S, D = 2, 8, 128  # batch=2, seq=8, features=128 (lane-aligned)

    x = jax.random.normal(kx, (B, S, D), dtype=jnp.float32)

    # LayerNorm params: ones / zeros (as in module __init__)
    a_2 = jnp.ones((D,), jnp.float32)
    b_2 = jnp.zeros((D,), jnp.float32)

    # Deterministic sublayer (Linear(size, size)) parameters
    w = jax.random.normal(kw, (D, D), dtype=jnp.float32) * 0.02
    w_b = jax.random.normal(kb, (D,), dtype=jnp.float32) * 0.02

    ref = _reference(x, a_2, b_2, w, w_b)

    # Exact f32-matmul path (bit-faithful to the module's f32 forward).
    out_f32 = jax.block_until_ready(
        sublayer_connection(x, a_2, b_2, w, w_b, matmul_dtype=None))
    assert out_f32.shape == (B, S, D)
    assert jnp.allclose(out_f32, ref, atol=1e-3, rtol=1e-3), "mismatch (f32)"

    # Default path: bf16 MXU operands, f32 accumulate / LayerNorm / residual.
    out_bf16 = jax.block_until_ready(sublayer_connection(x, a_2, b_2, w, w_b))
    assert out_bf16.shape == (B, S, D)
    assert jnp.allclose(out_bf16, ref, atol=2e-2, rtol=2e-2), "mismatch (bf16)"

    # Row count not a multiple of the 8-row tile -> exercises the ragged
    # last-block (no-pad, no-copy) path.
    x_odd = x[:, :5, :]  # M = 10 rows
    ref_odd = _reference(x_odd, a_2, b_2, w, w_b)
    out_odd = jax.block_until_ready(
        sublayer_connection(x_odd, a_2, b_2, w, w_b, matmul_dtype=None))
    assert out_odd.shape == x_odd.shape
    assert jnp.allclose(out_odd, ref_odd, atol=1e-3, rtol=1e-3), \
        "mismatch (ragged path)"

    print("KERNEL_OK")
</pallas_src>

<mosaic_0001>
module attributes {stable_mosaic.version = 11 : i64} {
  func.func @_sublayer_connection_kernel(%arg0: i32, %arg1: memref<8x128xf32, #tpu.memory_space<vmem>>, %arg2: memref<3x128xf32, #tpu.memory_space<vmem>>, %arg3: memref<128x128xf32, #tpu.memory_space<vmem>>, %arg4: memref<8x128xf32, #tpu.memory_space<vmem>>) attributes {dimension_semantics = [#tpu.dimension_semantics<parallel>], iteration_bounds = array<i64: 2>, scalar_prefetch = 0 : i64, scratch_operands = 0 : i64, tpu.core_type = #tpu.core_type<tc>, window_params = [{transform_indices = @transform_0, window_bounds = array<i64: 8, 128>}, {pipeline_mode = #tpu.pipeline_mode<synchronous>, transform_indices = @transform_1, window_bounds = array<i64: 3, 128>}, {pipeline_mode = #tpu.pipeline_mode<synchronous>, transform_indices = @transform_2, window_bounds = array<i64: 128, 128>}, {transform_indices = @transform_3, window_bounds = array<i64: 8, 128>}]} {
    %c0 = arith.constant 0 : index
    %c0_0 = arith.constant 0 : index
    %0 = vector.load %arg1[%c0, %c0_0] : memref<8x128xf32, #tpu.memory_space<vmem>>, vector<8x128xf32>
    %c0_1 = arith.constant 0 : index
    %c0_2 = arith.constant 0 : index
    %1 = vector.load %arg2[%c0_1, %c0_2] : memref<3x128xf32, #tpu.memory_space<vmem>>, vector<3x128xf32>
    %2 = vector.extract_strided_slice %1 {offsets = [0, 0], sizes = [1, 128], strides = [1, 1]} : vector<3x128xf32> to vector<1x128xf32>
    %3 = vector.shape_cast %2 : vector<1x128xf32> to vector<128xf32>
    %4 = vector.extract_strided_slice %1 {offsets = [1, 0], sizes = [1, 128], strides = [1, 1]} : vector<3x128xf32> to vector<1x128xf32>
    %5 = vector.shape_cast %4 : vector<1x128xf32> to vector<128xf32>
    %6 = vector.extract_strided_slice %1 {offsets = [2, 0], sizes = [1, 128], strides = [1, 1]} : vector<3x128xf32> to vector<1x128xf32>
    %7 = vector.shape_cast %6 : vector<1x128xf32> to vector<128xf32>
    %cst = arith.constant dense<0.000000e+00> : vector<8xf32>
    %8 = vector.multi_reduction <add>, %0, %cst [1] : vector<8x128xf32> to vector<8xf32>
    %9 = vector.shape_cast %8 : vector<8xf32> to vector<8x1xf32>
    %cst_3 = arith.constant 1.280000e+02 : f32
    %10 = vector.broadcast %cst_3 : f32 to vector<8x1xf32>
    %11 = arith.divf %9, %10 : vector<8x1xf32>
    %12 = vector.broadcast %11 : vector<8x1xf32> to vector<8x128xf32>
    %13 = arith.subf %0, %12 : vector<8x128xf32>
    %14 = arith.mulf %13, %13 : vector<8x128xf32>
    %cst_4 = arith.constant dense<0.000000e+00> : vector<8xf32>
    %15 = vector.multi_reduction <add>, %14, %cst_4 [1] : vector<8x128xf32> to vector<8xf32>
    %16 = vector.shape_cast %15 : vector<8xf32> to vector<8x1xf32>
    %cst_5 = arith.constant 1.270000e+02 : f32
    %17 = vector.broadcast %cst_5 : f32 to vector<8x1xf32>
    %18 = arith.divf %16, %17 : vector<8x1xf32>
    %19 = math.sqrt %18 : vector<8x1xf32>
    %cst_6 = arith.constant 9.99999997E-7 : f32
    %20 = vector.broadcast %cst_6 : f32 to vector<8x1xf32>
    %21 = arith.addf %19, %20 : vector<8x1xf32>
    %cst_7 = arith.constant 1.000000e+00 : f32
    %22 = vector.broadcast %cst_7 : f32 to vector<8x1xf32>
    %23 = arith.divf %22, %21 : vector<8x1xf32>
    %24 = vector.broadcast %23 : vector<8x1xf32> to vector<8x128xf32>
    %25 = arith.mulf %13, %24 : vector<8x128xf32>
    %26 = vector.shape_cast %3 : vector<128xf32> to vector<1x128xf32>
    %27 = vector.broadcast %26 : vector<1x128xf32> to vector<8x128xf32>
    %28 = arith.mulf %27, %25 : vector<8x128xf32>
    %29 = vector.shape_cast %5 : vector<128xf32> to vector<1x128xf32>
    %30 = vector.broadcast %29 : vector<1x128xf32> to vector<8x128xf32>
    %31 = arith.addf %28, %30 : vector<8x128xf32>
    %c0_8 = arith.constant 0 : index
    %c0_9 = arith.constant 0 : index
    %32 = vector.load %arg3[%c0_8, %c0_9] : memref<128x128xf32, #tpu.memory_space<vmem>>, vector<128x128xf32>
    %cst_10 = arith.constant dense<0.000000e+00> : vector<8x128xf32>
    %33 = tpu.matmul %31, %32, %cst_10 {dimension_numbers = #tpu.dot_dimension_numbers<[1], [0], [0], [1], [0, 0, 1, 1], [], []>} : vector<8x128xf32>, vector<128x128xf32>, vector<8x128xf32> -> vector<8x128xf32>
    %34 = vector.shape_cast %7 : vector<128xf32> to vector<1x128xf32>
    %35 = vector.broadcast %34 : vector<1x128xf32> to vector<8x128xf32>
    %36 = arith.addf %33, %35 : vector<8x128xf32>
    %37 = arith.addf %0, %36 : vector<8x128xf32>
    %c0_11 = arith.constant 0 : index
    %c0_12 = arith.constant 0 : index
    %38 = vector.load %arg4[%c0_11, %c0_12] : memref<8x128xf32, #tpu.memory_space<vmem>>, vector<8x128xf32>
    tpu.vector_store %arg4[%c0_11, %c0_12], %37 {strides = array<i32>} : memref<8x128xf32, #tpu.memory_space<vmem>>, vector<8x128xf32>,
    return
  }
  func.func @transform_0(%arg0: i32) -> (i32, i32) {
    %c0_i32 = arith.constant 0 : i32
    %c0_i32_0 = arith.constant 0 : i32
    return %arg0, %c0_i32 : i32, i32
  }
  func.func @transform_1(%arg0: i32) -> (i32, i32) {
    %c0_i32 = arith.constant 0 : i32
    %c0_i32_0 = arith.constant 0 : i32
    %c0_i32_1 = arith.constant 0 : i32
    return %c0_i32, %c0_i32_0 : i32, i32
  }
  func.func @transform_2(%arg0: i32) -> (i32, i32) {
    %c0_i32 = arith.constant 0 : i32
    %c0_i32_0 = arith.constant 0 : i32
    %c0_i32_1 = arith.constant 0 : i32
    return %c0_i32, %c0_i32_0 : i32, i32
  }
  func.func @transform_3(%arg0: i32) -> (i32, i32) {
    %c0_i32 = arith.constant 0 : i32
    %c0_i32_0 = arith.constant 0 : i32
    return %arg0, %c0_i32 : i32, i32
  }
}

</mosaic_0001>

<llo_original>
// kernel: tpu_custom_call.1
$region0: #{tpu_custom_call.1}
  #allocation0 [shape = 'u32[]', space=smem, size = 0x4, offset = 0x4, fixed_abs, tag = 'smem constant byte address 0x4 - core index']
  #allocation1 [shape = 'u32[144,128]{1,0:T(1,128)}', space=vmem, size = 0x12000, scoped, tag = 'internal scratch']
  %s0 = inlined_call_operand.hbm [shape: f32[16,128], index: 0, kind: input, shape index: {}]
  %s1 = inlined_call_operand.hbm [shape: f32[3,128], index: 1, kind: input, shape index: {}]
  %s2 = inlined_call_operand.hbm [shape: f32[128,128], index: 2, kind: input, shape index: {}]
  %s3 = inlined_call_operand.hbm [shape: f32[16,128], index: 3, kind: output, shape index: {}]
  %s4 = sld [smem:[#allocation0]]
  $region57: #{tpu_custom_call.1} parent=0
    _
  %s6 = ssub.s32 1, %s4
  %s7 = scalar_select 0, %s6, %s4
  $region1: #{tpu_custom_call.1} parent=0
    #allocation2 [shape = 'u8[8192]{0}', space=vmem, size = 0x2000, scoped, tag = 'input window, operand 0']
    #allocation3 [shape = 's32[2]{0}', space=sflag, size = 0x8, scoped, tag = 'scoped memory for tpu_custom_call.1']
    #allocation4 [shape = 's32[2]{0}', space=sflag, size = 0x8, scoped, tag = 'scoped memory for tpu_custom_call.1']
    #allocation5 [shape = 'u8[2048]{0}', space=vmem, size = 0x800, scoped, tag = 'input window, operand 1, single buffered']
    #allocation6 [shape = 's32[1]{0}', space=sflag, size = 0x4, scoped, tag = 'scoped memory for tpu_custom_call.1']
    #allocation7 [shape = 'u8[65536]{0}', space=vmem, size = 0x10000, scoped, tag = 'input window, operand 2, single buffered']
    #allocation8 [shape = 'u8[8192]{0}', space=vmem, size = 0x2000, scoped, tag = 'output window, operand 0']
    %8 = vsyncpa [#allocation3], 0
    %s9 = scalar_lea.sflag [#allocation3], 1
    %10 = vsyncpa %s9, 0
    %11 = vsyncpa [#allocation6], 0
    %12 = vsyncpa [#allocation4], 0
    %s13 = scalar_lea.sflag [#allocation4], 1
    %14 = vsyncpa %s13, 0
    loop: start=0, step=1, limit=4
    $region2: #{tpu_custom_call.1} parent=1 // loop_pre_header
      _
    $region3: #{tpu_custom_call.1} parent=1 // loop_header
      %s16 = sphi 0, %s20
      %p17 = scmp.ge.s32.totalorder %s16, 4
      %s26 = sphi 0, %s28
      %s29 = sphi 0, %s26
      %s30 = sphi 0, %s29
      %s46 = sphi 0, %s30
      %s50 = sphi 0, %s50
      %s52 = sphi 0, %s50
      %s53 = sphi 0, %s52
      %s67 = sphi 0, %s53
      %s71 = sphi 0, %s71
      %s73 = sphi 0, %s71
      %s74 = sphi 0, %s73
      %s88 = sphi 0, %s74
      %s94 = sphi 0, %s96
      %s97 = sphi 0, %s94
      %s98 = sphi 0, %s97
      %s114 = sphi 0, %s98
    $region4: #{tpu_custom_call.1} parent=1 // loop_header_branch
      %19 = sbr.rel (%p17) target = $region8
    $region5: #{tpu_custom_call.1} parent=1 // loop_body
      %s21 = ssub.s32 %s16, 1
      %s22 = ssub.s32 %s16, 2
      %s23 = sadd.s32 %s16, 1
      %s24 = ssub.s32 %s16, %s23
      %p25 = scmp.eq.s32.totalorder %s24, 0
      %s27 = sadd.s32 %s26, 1
      %s28 = scalar_select %p25, %s26, %s27
      %p31 = pneg %p25
      %p32 = scmp.eq.s32.totalorder %s16, 1
      %p33 = por %p31, %p32
      %p34 = scmp.ne.s32.totalorder %s26, %s29
      %p35 = scmp.eq.s32.totalorder %s16, 0
      %p36 = por %p34, %p35
      %p37 = scmp.ne.s32.totalorder %s26, %s29
      %p38 = scmp.eq.s32.totalorder %s21, 1
      %p39 = por %p37, %p38
      %p40 = scmp.ne.s32.totalorder %s29, %s30
      %p41 = scmp.eq.s32.totalorder %s21, 0
      %p42 = por %p40, %p41
      %p43 = scmp.ne.s32.totalorder %s29, %s30
      %p44 = scmp.eq.s32.totalorder %s22, 1
      %p45 = por %p43, %p44
      %p47 = scmp.ne.s32.totalorder %s30, %s46
      %p48 = scmp.eq.s32.totalorder %s22, 0
      %p49 = por %p47, %p48
      %s51 = sadd.s32 %s50, 1
      %p54 = scmp.eq.s32.totalorder %s16, 1
      %p55 = scmp.ne.s32.totalorder %s50, %s52
      %p56 = scmp.eq.s32.totalorder %s16, 0
      %p57 = por %p55, %p56
      %p58 = scmp.ne.s32.totalorder %s50, %s52
      %p59 = scmp.eq.s32.totalorder %s21, 1
      %p60 = por %p58, %p59
      %p61 = scmp.ne.s32.totalorder %s52, %s53
      %p62 = scmp.eq.s32.totalorder %s21, 0
      %p63 = por %p61, %p62
      %p64 = scmp.ne.s32.totalorder %s52, %s53
      %p65 = scmp.eq.s32.totalorder %s22, 1
      %p66 = por %p64, %p65
      %p68 = scmp.ne.s32.totalorder %s53, %s67
      %p69 = scmp.eq.s32.totalorder %s22, 0
      %p70 = por %p68, %p69
      %s72 = sadd.s32 %s71, 1
      %p75 = scmp.eq.s32.totalorder %s16, 1
      %p76 = scmp.ne.s32.totalorder %s71, %s73
      %p77 = scmp.eq.s32.totalorder %s16, 0
      %p78 = por %p76, %p77
      %p79 = scmp.ne.s32.totalorder %s71, %s73
      %p80 = scmp.eq.s32.totalorder %s21, 1
      %p81 = por %p79, %p80
      %p82 = scmp.ne.s32.totalorder %s73, %s74
      %p83 = scmp.eq.s32.totalorder %s21, 0
      %p84 = por %p82, %p83
      %p85 = scmp.ne.s32.totalorder %s73, %s74
      %p86 = scmp.eq.s32.totalorder %s22, 1
      %p87 = por %p85, %p86
      %p89 = scmp.ne.s32.totalorder %s74, %s88
      %p90 = scmp.eq.s32.totalorder %s22, 0
      %p91 = por %p89, %p90
      %s92 = ssub.s32 %s16, %s23
      %p93 = scmp.eq.s32.totalorder %s92, 0
      %s95 = sadd.s32 %s94, 1
      %s96 = scalar_select %p93, %s94, %s95
      %p99 = pneg %p93
      %p100 = scmp.eq.s32.totalorder %s16, 1
      %p101 = por %p99, %p100
      %p102 = scmp.ne.s32.totalorder %s94, %s97
      %p103 = scmp.eq.s32.totalorder %s16, 0
      %p104 = por %p102, %p103
      %p105 = scmp.ne.s32.totalorder %s94, %s97
      %p106 = scmp.eq.s32.totalorder %s21, 1
      %p107 = por %p105, %p106
      %p108 = scmp.ne.s32.totalorder %s97, %s98
      %p109 = scmp.eq.s32.totalorder %s21, 0
      %p110 = por %p108, %p109
      %p111 = scmp.ne.s32.totalorder %s97, %s98
      %p112 = scmp.eq.s32.totalorder %s22, 1
      %p113 = por %p111, %p112
      %p115 = scmp.ne.s32.totalorder %s98, %s114
      %p116 = scmp.eq.s32.totalorder %s22, 0
      %p117 = por %p115, %p116
      %p118 = scmp.le.s32.totalorder 1, %s16
      %p119 = scmp.lt.s32.totalorder %s16, 3
      %p120 = pnand %p118, %p119
      %p121 = pneg %p120
      // Predicated region
      $region9: #{tpu_custom_call.1} parent=5 // pred_check
        _
      $region10: #{tpu_custom_call.1} parent=5 // pred_check_branch
        %123 = sbr.rel (%p120) target = $region12
      $region11: #{tpu_custom_call.1} parent=5 // pred_region
        %s124 = ssub.s32 %s16, 1
        // Predicated region
        $region13: #{tpu_custom_call.1} parent=11 // pred_check
          %p125 = pneg %p63
        $region14: #{tpu_custom_call.1} parent=11 // pred_check_branch
          %127 = sbr.rel (%p125) target = $region16
        $region15: #{tpu_custom_call.1} parent=11 // pred_region
          %s129 = ssub.s32 64, 64
          %130 = vsyncadd [#allocation6], %s129
          %s132 = sshll.u32 [#allocation5], 4
          %s133 = int_to_ptr.vmem [resolvable:$true] %s132
          %135 = dma.hbm_to_vmem [thread:$0]  %s1, 64, %s133, [#allocation6]
        $region16: #{tpu_custom_call.1} parent=11 // pred_fallthru
          _
        // Predicated region
        $region17: #{tpu_custom_call.1} parent=11 // pred_check
          %p136 = pneg %p84
        $region18: #{tpu_custom_call.1} parent=11 // pred_check_branch
          %138 = sbr.rel (%p136) target = $region20
        $region19: #{tpu_custom_call.1} parent=11 // pred_region
          %s140 = ssub.s32 2048, 2048
          %141 = vsyncadd [#allocation6], %s140
          %s142 = sshll.u32 [#allocation7], 4
          %s143 = int_to_ptr.vmem [resolvable:$true] %s142
          %148 = dma.hbm_to_vmem [thread:$0]  %s2, 2048, %s143, [#allocation6], 128, 128, 8
        $region20: #{tpu_custom_call.1} parent=11 // pred_fallthru
          _
      $region12: #{tpu_custom_call.1} parent=5 // pred_fallthru
        _
      %p149 = scmp.lt.s32.totalorder %s16, 2
      // Predicated region
      $region21: #{tpu_custom_call.1} parent=5 // pred_check
        %p150 = pneg %p149
      $region22: #{tpu_custom_call.1} parent=5 // pred_check_branch
        %152 = sbr.rel (%p150) target = $region24
      $region23: #{tpu_custom_call.1} parent=5 // pred_region
        // Predicated region
        $region25: #{tpu_custom_call.1} parent=23 // pred_check
          %p153 = pneg %p36
        $region26: #{tpu_custom_call.1} parent=23 // pred_check_branch
          %155 = sbr.rel (%p153) target = $region28
        $region27: #{tpu_custom_call.1} parent=23 // pred_region
          %s156 = sand.u32 %s26, 1
          %s157 = scalar_lea.sflag [#allocation3], %s156
          %s158 = sand.u32 %s26, 1
          %s159 = smul.addr %s158, 8
          %s160 = scalar_lea.vmem [#allocation2], %s159
          %s162 = ssub.s32 128, 128
          %163 = vsyncadd %s157, %s162
          %s164 = smul.addr %s16, 128
          %s165 = scalar_lea.hbm %s0, %s164
          %s167 = sshll.u32 %s160, 4
          %s168 = int_to_ptr.vmem [resolvable:$true] %s167
          %170 = dma.hbm_to_vmem [thread:$0]  %s165, 128, %s168, %s157
        $region28: #{tpu_custom_call.1} parent=23 // pred_fallthru
          _
      $region24: #{tpu_custom_call.1} parent=5 // pred_fallthru
        _
      %p171 = scmp.le.s32.totalorder 1, %s16
      %p172 = scmp.lt.s32.totalorder %s16, 3
      %p173 = pnand %p171, %p172
      %p174 = pneg %p173
      // Predicated region
      $region29: #{tpu_custom_call.1} parent=5 // pred_check
        _
      $region30: #{tpu_custom_call.1} parent=5 // pred_check_branch
        %176 = sbr.rel (%p173) target = $region32
      $region31: #{tpu_custom_call.1} parent=5 // pred_region
        %s177 = ssub.s32 %s16, 1
        %s178 = sand.u32 %s29, 1
        %s179 = scalar_lea.sflag [#allocation3], %s178
        %s180 = sand.u32 %s29, 1
        %s181 = smul.addr %s180, 8
        %s182 = scalar_lea.vmem [#allocation2], %s181
        // Predicated region
        $region33: #{tpu_custom_call.1} parent=31 // pred_check
          %p183 = pneg %p42
        $region34: #{tpu_custom_call.1} parent=31 // pred_check_branch
          %185 = sbr.rel (%p183) target = $region36
        $region35: #{tpu_custom_call.1} parent=31 // pred_region
          %186 = dma.done %s179, 128
        $region36: #{tpu_custom_call.1} parent=31 // pred_fallthru
          _
        // Predicated region
        $region37: #{tpu_custom_call.1} parent=31 // pred_check
          %p187 = pneg %p63
        $region38: #{tpu_custom_call.1} parent=31 // pred_check_branch
          %189 = sbr.rel (%p187) target = $region40
        $region39: #{tpu_custom_call.1} parent=31 // pred_region
          %190 = dma.done [#allocation6], 64
        $region40: #{tpu_custom_call.1} parent=31 // pred_fallthru
          _
        // Predicated region
        $region41: #{tpu_custom_call.1} parent=31 // pred_check
          %p191 = pneg %p84
        $region42: #{tpu_custom_call.1} parent=31 // pred_check_branch
          %193 = sbr.rel (%p191) target = $region44
        $region43: #{tpu_custom_call.1} parent=31 // pred_region
          %194 = dma.done [#allocation6], 2048
        $region44: #{tpu_custom_call.1} parent=31 // pred_fallthru
          _
        %s195 = sand.u32 %s29, 1
        %s196 = scalar_lea.sflag [#allocation3], %s195
        %s197 = sand.u32 %s29, 1
        %s198 = smul.addr %s197, 8
        %s199 = scalar_lea.vmem [#allocation2], %s198
        %p200 = pneg %p42
        %p201 = pneg %p39
        %p202 = pneg %p63
        %p203 = pneg %p60
        %p204 = pneg %p84
        %p205 = pneg %p81
        %p206 = pneg %p110
        %p207 = pneg %p107
        %s208 = sand.u32 %s97, 1
        %s209 = scalar_lea.sflag [#allocation4], %s208
        %s210 = sand.u32 %s97, 1
        %s211 = smul.addr %s210, 8
        %s212 = scalar_lea.vmem [#allocation8], %s211
        %v213 = vld [vmem:[%s182] sm:$0xff]
        %v214 = vld [vmem:[#allocation5] sm:$0x7]
        %215 = vadd.xlane.f32.xlu0 %v213
        %v216 = vpop.xlane.xlu0 %215
        %v217 = vrcp.pop 128.0
        %v218 = vmul.f32 %v216, %v217
        %v219 = vsub.f32 %v213, %v218
        %v220 = vmul.f32 %v219, %v219
        %221 = vadd.xlane.f32.xlu0 %v220
        %v222 = vpop.xlane.xlu0 %221
        %v223 = vrcp.pop 127.0
        %v224 = vmul.f32 %v222, %v223
        %v225 = vrsqrt.pop %v224
        %v226 = vmul.f32 %v224, %v225
        %vm227 = vcmp.eq.f32.partialorder %v224, inf
        %v228 = vsel %vm227, %v224, %v226
        %vm229 = vcmp.eq.f32.partialorder %v224, 0.0
        %v230 = vand.u32 %v224, 2147483648
        %v231 = vsel %vm229, %v230, %v228
        %v232 = vadd.f32 %v231, 1e-06
        %v233 = vrcp.pop %v232
        %v234 = vmul.f32 1.0, %v233
        %v235 = vmul.f32 %v219, %v234
        %v236 = vlaneseq
        %v237 = vshrl.u32 %v236, 7
        %v238 = vsub.s32 0, %v237
        %v239 = vrot.slane %v214, %v238
        %v240 = vmul.f32 %v239, %v235
        %v241 = vlaneseq
        %v242 = vshrl.u32 %v241, 7
        %v243 = vsub.s32 1, %v242
        %v244 = vrot.slane %v214, %v243
        %v245 = vadd.f32 %v240, %v244
        %v246 = vld [vmem:[#allocation7] sm:$0xff]
        %v247 = vld [vmem:[#allocation7 + $0x8] sm:$0xff]
        %v248 = vld [vmem:[#allocation7 + $0x10] sm:$0xff]
        %v249 = vld [vmem:[#allocation7 + $0x18] sm:$0xff]
        %v250 = vld [vmem:[#allocation7 + $0x20] sm:$0xff]
        %v251 = vld [vmem:[#allocation7 + $0x28] sm:$0xff]
        %v252 = vld [vmem:[#allocation7 + $0x30] sm:$0xff]
        %v253 = vld [vmem:[#allocation7 + $0x38] sm:$0xff]
        %v254 = vld [vmem:[#allocation7 + $0x40] sm:$0xff]
        %v255 = vld [vmem:[#allocation7 + $0x48] sm:$0xff]
        %v256 = vld [vmem:[#allocation7 + $0x50] sm:$0xff]
        %v257 = vld [vmem:[#allocation7 + $0x58] sm:$0xff]
        %v258 = vld [vmem:[#allocation7 + $0x60] sm:$0xff]
        %v259 = vld [vmem:[#allocation7 + $0x68] sm:$0xff]
        %v260 = vld [vmem:[#allocation7 + $0x70] sm:$0xff]
        %v261 = vld [vmem:[#allocation7 + $0x78] sm:$0xff]
        %v262 = vlaneseq
        %v263 = vshrl.u32 %v262, 7
        %v264 = vsub.s32 2, %v263
        %v265 = vrot.slane %v214, %v264
        %266 = vmatprep.subr.mxu0 0.0
        %267 = vmatpush1.msra.mxu0 %v261
        %268 = vmatprep.subr.mxu0 0.0
        %269 = vmatpush1.msra.mxu0 %v260
        %270 = vmatprep.subr.mxu0 0.0
        %271 = vmatpush1.msra.mxu0 %v259
        %272 = vmatprep.subr.mxu0 0.0
        %273 = vmatpush1.msra.mxu0 %v258
        %274 = vmatprep.subr.mxu0 0.0
        %275 = vmatpush1.msra.mxu0 %v257
        %276 = vmatprep.subr.mxu0 0.0
        %277 = vmatpush1.msra.mxu0 %v256
        %278 = vmatprep.subr.mxu0 0.0
        %279 = vmatpush1.msra.mxu0 %v255
        %280 = vmatprep.subr.mxu0 0.0
        %281 = vmatpush1.msra.mxu0 %v254
        %282 = vmatprep.subr.mxu0 0.0
        %283 = vmatpush1.msra.mxu0 %v253
        %284 = vmatprep.subr.mxu0 0.0
        %285 = vmatpush1.msra.mxu0 %v252
        %286 = vmatprep.subr.mxu0 0.0
        %287 = vmatpush1.msra.mxu0 %v251
        %288 = vmatprep.subr.mxu0 0.0
        %289 = vmatpush1.msra.mxu0 %v250
        %290 = vmatprep.subr.mxu0 0.0
        %291 = vmatpush1.msra.mxu0 %v249
        %292 = vmatprep.subr.mxu0 0.0
        %293 = vmatpush1.msra.mxu0 %v248
        %294 = vmatprep.subr.mxu0 0.0
        %295 = vmatpush1.msra.mxu0 %v247
        %296 = vmatprep.subr.mxu0 0.0
        %297 = vmatpush1.msra.mxu0 %v246
        %298 = vmatprep.subr.mxu0 0.0
        %299 = vmatpush2.msra.mxu0 0.0
        %300 = vmatprep.subr.mxu0 0.0
        %301 = vmatpush2.msra.mxu0 0.0
        %302 = vmatprep.subr.mxu0 0.0
        %303 = vmatpush2.msra.mxu0 0.0
        %304 = vmatprep.subr.mxu0 0.0
        %305 = vmatpush2.msra.mxu0 0.0
        %306 = vmatprep.subr.mxu0 0.0
        %307 = vmatpush2.msra.mxu0 0.0
        %308 = vmatprep.subr.mxu0 0.0
        %309 = vmatpush2.msra.mxu0 0.0
        %310 = vmatprep.subr.mxu0 0.0
        %311 = vmatpush2.msra.mxu0 0.0
        %312 = vmatprep.subr.mxu0 0.0
        %313 = vmatpush2.msra.mxu0 0.0
        %314 = vmatprep.subr.mxu0 0.0
        %315 = vmatpush2.msra.mxu0 0.0
        %316 = vmatprep.subr.mxu0 0.0
        %317 = vmatpush2.msra.mxu0 0.0
        %318 = vmatprep.subr.mxu0 0.0
        %319 = vmatpush2.msra.mxu0 0.0
        %320 = vmatprep.subr.mxu0 0.0
        %321 = vmatpush2.msra.mxu0 0.0
        %322 = vmatprep.subr.mxu0 0.0
        %323 = vmatpush2.msra.mxu0 0.0
        %324 = vmatprep.subr.mxu0 0.0
        %325 = vmatpush2.msra.mxu0 0.0
        %326 = vmatprep.subr.mxu0 0.0
        %327 = vmatpush2.msra.mxu0 0.0
        %328 = vmatprep.subr.mxu0 0.0
        %329 = vmatpush2.msra.mxu0 0.0
        %330 = vmatprep.mubr.f32.mxu0 0.0
        %331 = vmatmul.mubr.f32.gmra.mxu0 %v245
        %v332 = vpop.f32.mrf.mxu0
        %v333 = vadd.f32 %v265, %v332
        %v334 = vpop.f32.mrf.mxu0
        %335 = vdwg.mxu0
        %v336 = vadd.f32 %v213, %v333
        %337 = vst [vmem:[%s212] sm:$0xff] %v336
        %s338 = sand.u32 %s97, 1
        %s339 = scalar_lea.sflag [#allocation4], %s338
        %s340 = sand.u32 %s97, 1
        %s341 = smul.addr %s340, 8
        %s342 = scalar_lea.vmem [#allocation8], %s341
        // Predicated region
        $region45: #{tpu_custom_call.1} parent=31 // pred_check
          %p343 = pneg %p107
        $region46: #{tpu_custom_call.1} parent=31 // pred_check_branch
          %345 = sbr.rel (%p343) target = $region48
        $region47: #{tpu_custom_call.1} parent=31 // pred_region
          %s347 = ssub.s32 128, 128
          %348 = vsyncadd %s339, %s347
          %s349 = smul.addr %s21, 128
          %s350 = scalar_lea.hbm %s3, %s349
          %s352 = sshll.u32 %s342, 4
          %s353 = int_to_ptr.vmem [resolvable:$true] %s352
          %355 = dma.vmem_to_hbm [thread:$0]  %s353, 128, %s350, %s339
        $region48: #{tpu_custom_call.1} parent=31 // pred_fallthru
          _
      $region32: #{tpu_custom_call.1} parent=5 // pred_fallthru
        _
      %p356 = scmp.le.s32.totalorder 2, %s16
      // Predicated region
      $region49: #{tpu_custom_call.1} parent=5 // pred_check
        %p357 = pneg %p356
      $region50: #{tpu_custom_call.1} parent=5 // pred_check_branch
        %359 = sbr.rel (%p357) target = $region52
      $region51: #{tpu_custom_call.1} parent=5 // pred_region
        %s360 = ssub.s32 %s16, 2
        // Predicated region
        $region53: #{tpu_custom_call.1} parent=51 // pred_check
          %p361 = pneg %p113
        $region54: #{tpu_custom_call.1} parent=51 // pred_check_branch
          %363 = sbr.rel (%p361) target = $region56
        $region55: #{tpu_custom_call.1} parent=51 // pred_region
          %s364 = sand.u32 %s98, 1
          %s365 = scalar_lea.sflag [#allocation4], %s364
          %s366 = sand.u32 %s98, 1
          %s367 = smul.addr %s366, 8
          %s368 = scalar_lea.vmem [#allocation8], %s367
          %369 = dma.done %s365, 128
        $region56: #{tpu_custom_call.1} parent=51 // pred_fallthru
          _
      $region52: #{tpu_custom_call.1} parent=5 // pred_fallthru
        _
    $region6: #{tpu_custom_call.1} parent=1 // loop_footer
      %s20 = sadd.s32 1, %s16
    $region7: #{tpu_custom_call.1} parent=1 // loop_footer_branch
      %15 = sbr.rel target = $region3
    $region8: #{tpu_custom_call.1} parent=1 // loop_exit
      _
    %370 = vsyncpa [#allocation3], 1
    %s371 = scalar_lea.sflag [#allocation3], 1
    %372 = vsyncpa %s371, 1
    %373 = vsyncpa [#allocation6], 1
    %374 = vsyncpa [#allocation4], 1
    %s375 = scalar_lea.sflag [#allocation4], 1
    %376 = vsyncpa %s375, 1

</llo_original>
